<compile_context>
chip_gen: v7x
topology: tpu7x:2x2x1
jax: 0.10.0
libtpu: 0.0.40
codegen_flags: <defaults>
</compile_context>

<pallas_src>
import jax
import jax.numpy as jnp
from jax.experimental import pallas as pl
from jax.experimental.pallas import tpu as pltpu

SIGMA_DATA = 1.0


def _gc_denoiser_kernel(feat_ref, act_ref, w1_ref, wa_ref, wsig_ref, b1_ref,
                        w2_ref, b2_ref, out_ref):
    # act slab layout along lanes: [sigma | action(Da)]  (f32)
    act = act_ref[...]                              # (TM, 1+Da) f32
    sigma = act[:, 0:1]                             # (TM, 1)

    denom = sigma * sigma + SIGMA_DATA * SIGMA_DATA
    c_in = jax.lax.rsqrt(denom)                     # 1 / sqrt(sigma^2 + sd^2)
    c_skip = (SIGMA_DATA * SIGMA_DATA) / denom
    c_out = sigma * SIGMA_DATA * c_in

    # Scale the whole slab by c_in; the sigma lane multiplies the zero row of
    # Wa, so only the action columns contribute to the matmul.
    a_in = (act * c_in).astype(jnp.bfloat16)        # (TM, 1+Da) bf16
    sig_feat = jnp.log(sigma) * 0.25                # (TM, 1) sigma embedding

    h = (jnp.dot(feat_ref[...], w1_ref[...], preferred_element_type=jnp.float32)
         + jnp.dot(a_in, wa_ref[...], preferred_element_type=jnp.float32)
         + sig_feat * wsig_ref[...]                 # (TM,1)*(1,H_pad) outer prod
         + b1_ref[...])
    h = jax.nn.gelu(h, approximate=True).astype(jnp.bfloat16)   # (TM, H_pad)

    m = jnp.dot(h, w2_ref[...], preferred_element_type=jnp.float32) + b2_ref[...]

    # Karras preconditioning (f32).
    out_ref[...] = m * c_out + act[:, 1:] * c_skip


def _round_up(x, m):
    return ((x + m - 1) // m) * m


def _pick_row_tile(N, row_tile):
    N16 = _round_up(max(N, 1), 16)
    TM = min(_round_up(row_tile, 16), N16)
    # Keep >= 2 grid programs whenever N allows (v7x has 2 TensorCores).
    if TM == N16 and N16 >= 32:
        TM = _round_up(pl.cdiv(N16, 2), 16)
    return TM


def gc_denoiser_forward(state, action, goal, plan, sigma, params, row_tile=1024):
    """state/action/goal/plan: (B, T, D*) float32; sigma: (B,) float32 (>0)."""
    B, T, Da = action.shape
    Ds, Dg, Dp = state.shape[-1], goal.shape[-1], plan.shape[-1]
    H = params["w2"].shape[0]
    H_pad = max(_round_up(H, 128), 128)     # lane-dense hidden width
    Dfeat = Ds + Dg + Dp
    N = B * T

    TM = _pick_row_tile(N, row_tile)
    N_pad = _round_up(N, TM)

    # --- activation slabs (narrow, no lane padding) ---------------------------
    feat = jnp.concatenate([state, goal, plan], axis=-1) \
              .reshape(N, Dfeat).astype(jnp.bfloat16)                  # (N, Dfeat)
    sigma_col = jnp.repeat(sigma.astype(jnp.float32), T).reshape(N, 1)
    act_sig = jnp.concatenate(
        [sigma_col, action.reshape(N, Da).astype(jnp.float32)], axis=-1)  # (N, 1+Da)

    if N_pad != N:
        pad = N_pad - N
        feat = jnp.concatenate([feat, jnp.zeros((pad, Dfeat), feat.dtype)], axis=0)
        pad_rows = jnp.zeros((pad, 1 + Da), jnp.float32).at[:, 0].set(1.0)  # sigma=1 avoids log(0)
        act_sig = jnp.concatenate([act_sig, pad_rows], axis=0)

    # --- weights (zero-padded to H_pad, resident in VMEM) ---------------------
    w1_raw = jnp.concatenate([params["ws"], params["wg"], params["wp"]], axis=0)  # (Dfeat, H)
    w1 = jnp.zeros((Dfeat, H_pad), jnp.float32).at[:, :H].set(w1_raw) \
            .astype(jnp.bfloat16)                                      # (Dfeat, H_pad)
    wa = jnp.zeros((1 + Da, H_pad), jnp.float32).at[1:, :H].set(params["wa"]) \
            .astype(jnp.bfloat16)                                      # (1+Da, H_pad), row 0 zero
    wsig = jnp.zeros((1, H_pad), jnp.float32).at[:, :H].set(params["wsig"])
    b1 = jnp.zeros((1, H_pad), jnp.float32).at[:, :H].set(params["b1"])  # pad cols zero (gelu(0)=0)
    w2 = jnp.zeros((H_pad, Da), jnp.float32).at[:H, :].set(params["w2"]) \
            .astype(jnp.bfloat16)                                      # pad rows zero
    b2 = params["b2"].astype(jnp.float32)                              # (1, Da)

    grid = (N_pad // TM,)

    # VMEM budget: double-buffered row tiles + (double-buffered) tiny weights.
    tile_bytes = TM * (Dfeat * 2 + (1 + Da) * 4 + Da * 4)
    weight_bytes = (Dfeat * H_pad * 2 + (1 + Da) * H_pad * 2 + 2 * H_pad * 4
                    + H_pad * Da * 2 + Da * 4)
    vmem_limit = int(min(max(2 * tile_bytes + 2 * weight_bytes + (8 << 20),
                             16 << 20), 48 << 20))

    cost = pl.CostEstimate(
        flops=2 * N_pad * H_pad * (Dfeat + (1 + Da) + Da),
        transcendentals=N_pad * (H_pad + 2),
        bytes_accessed=N_pad * (Dfeat * 2 + (1 + Da) * 4 + Da * 4) + weight_bytes)

    out = pl.pallas_call(
        _gc_denoiser_kernel,
        out_shape=jax.ShapeDtypeStruct((N_pad, Da), jnp.float32),
        grid=grid,
        in_specs=[
            pl.BlockSpec((TM, Dfeat), lambda i: (i, 0)),      # feature slab (bf16)
            pl.BlockSpec((TM, 1 + Da), lambda i: (i, 0)),     # [sigma|action] slab (f32)
            pl.BlockSpec((Dfeat, H_pad), lambda i: (0, 0)),   # W1
            pl.BlockSpec((1 + Da, H_pad), lambda i: (0, 0)),  # Wa (zero sigma row)
            pl.BlockSpec((1, H_pad), lambda i: (0, 0)),       # wsig
            pl.BlockSpec((1, H_pad), lambda i: (0, 0)),       # b1
            pl.BlockSpec((H_pad, Da), lambda i: (0, 0)),      # W2 (zero pad rows)
            pl.BlockSpec((1, Da), lambda i: (0, 0)),          # b2
        ],
        out_specs=pl.BlockSpec((TM, Da), lambda i: (i, 0)),
        compiler_params=pltpu.CompilerParams(
            dimension_semantics=("parallel",),
            vmem_limit_bytes=vmem_limit),
        cost_estimate=cost,
    )(feat, act_sig, w1, wa, wsig, b1, w2, b2)

    return out[:N].reshape(B, T, Da)


def _reference_forward(state, action, goal, plan, sigma, params):
    """Pure-JAX reference mirroring GCDenoiser.forward (same bf16 matmul path)."""
    bf = jnp.bfloat16
    s = sigma[:, None, None].astype(jnp.float32)
    denom = s * s + SIGMA_DATA ** 2
    c_skip = SIGMA_DATA ** 2 / denom
    c_out = s * SIGMA_DATA / jnp.sqrt(denom)
    c_in = 1.0 / jnp.sqrt(denom)

    feat = jnp.concatenate([state, goal, plan], axis=-1).astype(bf)
    w1 = jnp.concatenate([params["ws"], params["wg"], params["wp"]], axis=0).astype(bf)
    a_in = (action * c_in).astype(bf)
    sig_feat = jnp.log(s) * 0.25
    h = (jnp.einsum("btd,dh->bth", feat, w1, preferred_element_type=jnp.float32)
         + jnp.einsum("btd,dh->bth", a_in, params["wa"].astype(bf),
                      preferred_element_type=jnp.float32)
         + sig_feat * params["wsig"][None]
         + params["b1"][None])
    h = jax.nn.gelu(h, approximate=True).astype(bf)
    m = (jnp.einsum("bth,hd->btd", h, params["w2"].astype(bf),
                    preferred_element_type=jnp.float32)
         + params["b2"][None])
    return m * c_out + action * c_skip


def make_params(Ds, Da, Dg, Dp, H, key):
    ks = jax.random.split(key, 8)
    scale = lambda d: 1.0 / jnp.sqrt(jnp.float32(d))
    return {
        "ws": jax.random.normal(ks[0], (Ds, H), jnp.float32) * scale(Ds),
        "wa": jax.random.normal(ks[1], (Da, H), jnp.float32) * scale(Da),
        "wg": jax.random.normal(ks[2], (Dg, H), jnp.float32) * scale(Dg),
        "wp": jax.random.normal(ks[3], (Dp, H), jnp.float32) * scale(Dp),
        "wsig": jax.random.normal(ks[4], (1, H), jnp.float32),
        "b1": jax.random.normal(ks[5], (1, H), jnp.float32) * 0.02,
        "w2": jax.random.normal(ks[6], (H, Da), jnp.float32) * scale(H),
        "b2": jax.random.normal(ks[7], (1, Da), jnp.float32) * 0.02,
    }


if __name__ == "__main__":
    B, T = 2, 8
    Ds, Da, Dg, Dp, H = 16, 8, 16, 16, 32

    key = jax.random.PRNGKey(0)
    k_s, k_a, k_g, k_p, k_sig, k_w = jax.random.split(key, 6)
    state = jax.random.normal(k_s, (B, T, Ds), jnp.float32)
    action = jax.random.normal(k_a, (B, T, Da), jnp.float32)
    goal = jax.random.normal(k_g, (B, T, Dg), jnp.float32)
    plan = jax.random.normal(k_p, (B, T, Dp), jnp.float32)
    sigma = jnp.exp(jax.random.uniform(k_sig, (B,), jnp.float32,
                                       minval=-1.0, maxval=2.0))
    params = make_params(Ds, Da, Dg, Dp, H, k_w)

    out = gc_denoiser_forward(state, action, goal, plan, sigma, params)
    jax.block_until_ready(out)

    ref = _reference_forward(state, action, goal, plan, sigma, params)
    assert out.shape == (B, T, Da)
    assert jnp.allclose(out, ref, atol=5e-3, rtol=5e-3), \
        f"max err {jnp.max(jnp.abs(out - ref))}"
    print("KERNEL_OK")
</pallas_src>

<mosaic_0001>
module attributes {stable_mosaic.version = 11 : i64} {
  func.func @_gc_denoiser_kernel(%arg0: i32, %arg1: memref<16x48xbf16, #tpu.memory_space<vmem>>, %arg2: memref<16x9xf32, #tpu.memory_space<vmem>>, %arg3: memref<48x128xbf16, #tpu.memory_space<vmem>>, %arg4: memref<9x128xbf16, #tpu.memory_space<vmem>>, %arg5: memref<1x128xf32, #tpu.memory_space<vmem>>, %arg6: memref<1x128xf32, #tpu.memory_space<vmem>>, %arg7: memref<128x8xbf16, #tpu.memory_space<vmem>>, %arg8: memref<1x8xf32, #tpu.memory_space<vmem>>, %arg9: memref<16x8xf32, #tpu.memory_space<vmem>>) attributes {dimension_semantics = [#tpu.dimension_semantics<parallel>], iteration_bounds = array<i64: 1>, scalar_prefetch = 0 : i64, scratch_operands = 0 : i64, tpu.core_type = #tpu.core_type<tc>, window_params = [{transform_indices = @transform_0, window_bounds = array<i64: 16, 48>}, {transform_indices = @transform_1, window_bounds = array<i64: 16, 9>}, {pipeline_mode = #tpu.pipeline_mode<synchronous>, transform_indices = @transform_2, window_bounds = array<i64: 48, 128>}, {pipeline_mode = #tpu.pipeline_mode<synchronous>, transform_indices = @transform_3, window_bounds = array<i64: 9, 128>}, {pipeline_mode = #tpu.pipeline_mode<synchronous>, transform_indices = @transform_4, window_bounds = array<i64: 1, 128>}, {pipeline_mode = #tpu.pipeline_mode<synchronous>, transform_indices = @transform_5, window_bounds = array<i64: 1, 128>}, {pipeline_mode = #tpu.pipeline_mode<synchronous>, transform_indices = @transform_6, window_bounds = array<i64: 128, 8>}, {pipeline_mode = #tpu.pipeline_mode<synchronous>, transform_indices = @transform_7, window_bounds = array<i64: 1, 8>}, {transform_indices = @transform_8, window_bounds = array<i64: 16, 8>}]} {
    %c0 = arith.constant 0 : index
    %c0_0 = arith.constant 0 : index
    %0 = vector.load %arg2[%c0, %c0_0] : memref<16x9xf32, #tpu.memory_space<vmem>>, vector<16x9xf32>
    %1 = vector.extract_strided_slice %0 {offsets = [0, 0], sizes = [16, 1], strides = [1, 1]} : vector<16x9xf32> to vector<16x1xf32>
    %2 = arith.mulf %1, %1 : vector<16x1xf32>
    %cst = arith.constant 1.000000e+00 : f32
    %3 = vector.broadcast %cst : f32 to vector<16x1xf32>
    %4 = arith.addf %2, %3 : vector<16x1xf32>
    %5 = math.rsqrt %4 : vector<16x1xf32>
    %cst_1 = arith.constant 1.000000e+00 : f32
    %6 = vector.broadcast %cst_1 : f32 to vector<16x1xf32>
    %7 = arith.divf %6, %4 : vector<16x1xf32>
    %cst_2 = arith.constant 1.000000e+00 : f32
    %8 = vector.broadcast %cst_2 : f32 to vector<16x1xf32>
    %9 = arith.mulf %1, %8 : vector<16x1xf32>
    %10 = arith.mulf %9, %5 : vector<16x1xf32>
    %11 = vector.broadcast %5 : vector<16x1xf32> to vector<16x9xf32>
    %12 = arith.mulf %0, %11 : vector<16x9xf32>
    %13 = arith.truncf %12 : vector<16x9xf32> to vector<16x9xbf16>
    %14 = math.log %1 : vector<16x1xf32>
    %cst_3 = arith.constant 2.500000e-01 : f32
    %15 = vector.broadcast %cst_3 : f32 to vector<16x1xf32>
    %16 = arith.mulf %14, %15 : vector<16x1xf32>
    %c0_4 = arith.constant 0 : index
    %c0_5 = arith.constant 0 : index
    %17 = vector.load %arg1[%c0_4, %c0_5] : memref<16x48xbf16, #tpu.memory_space<vmem>>, vector<16x48xbf16>
    %c0_6 = arith.constant 0 : index
    %c0_7 = arith.constant 0 : index
    %18 = vector.load %arg3[%c0_6, %c0_7] : memref<48x128xbf16, #tpu.memory_space<vmem>>, vector<48x128xbf16>
    %cst_8 = arith.constant dense<0.000000e+00> : vector<16x128xf32>
    %19 = tpu.matmul %17, %18, %cst_8 {dimension_numbers = #tpu.dot_dimension_numbers<[1], [0], [0], [1], [0, 0, 1, 1], [], []>} : vector<16x48xbf16>, vector<48x128xbf16>, vector<16x128xf32> -> vector<16x128xf32>
    %c0_9 = arith.constant 0 : index
    %c0_10 = arith.constant 0 : index
    %20 = vector.load %arg4[%c0_9, %c0_10] : memref<9x128xbf16, #tpu.memory_space<vmem>>, vector<9x128xbf16>
    %cst_11 = arith.constant dense<0.000000e+00> : vector<16x128xf32>
    %21 = tpu.matmul %13, %20, %cst_11 {dimension_numbers = #tpu.dot_dimension_numbers<[1], [0], [0], [1], [0, 0, 1, 1], [], []>} : vector<16x9xbf16>, vector<9x128xbf16>, vector<16x128xf32> -> vector<16x128xf32>
    %22 = arith.addf %19, %21 : vector<16x128xf32>
    %c0_12 = arith.constant 0 : index
    %c0_13 = arith.constant 0 : index
    %23 = vector.load %arg5[%c0_12, %c0_13] : memref<1x128xf32, #tpu.memory_space<vmem>>, vector<1x128xf32>
    %24 = vector.broadcast %16 : vector<16x1xf32> to vector<16x128xf32>
    %25 = vector.broadcast %23 : vector<1x128xf32> to vector<16x128xf32>
    %26 = arith.mulf %24, %25 : vector<16x128xf32>
    %27 = arith.addf %22, %26 : vector<16x128xf32>
    %c0_14 = arith.constant 0 : index
    %c0_15 = arith.constant 0 : index
    %28 = vector.load %arg6[%c0_14, %c0_15] : memref<1x128xf32, #tpu.memory_space<vmem>>, vector<1x128xf32>
    %29 = vector.broadcast %28 : vector<1x128xf32> to vector<16x128xf32>
    %30 = arith.addf %27, %29 : vector<16x128xf32>
    %31 = arith.mulf %30, %30 : vector<16x128xf32>
    %32 = arith.mulf %30, %31 : vector<16x128xf32>
    %cst_16 = arith.constant 4.471500e-02 : f32
    %33 = vector.broadcast %cst_16 : f32 to vector<16x128xf32>
    %34 = arith.mulf %33, %32 : vector<16x128xf32>
    %35 = arith.addf %30, %34 : vector<16x128xf32>
    %cst_17 = arith.constant 0.797884583 : f32
    %36 = vector.broadcast %cst_17 : f32 to vector<16x128xf32>
    %37 = arith.mulf %36, %35 : vector<16x128xf32>
    %38 = math.tanh %37 : vector<16x128xf32>
    %cst_18 = arith.constant 1.000000e+00 : f32
    %39 = vector.broadcast %cst_18 : f32 to vector<16x128xf32>
    %40 = arith.addf %39, %38 : vector<16x128xf32>
    %cst_19 = arith.constant 5.000000e-01 : f32
    %41 = vector.broadcast %cst_19 : f32 to vector<16x128xf32>
    %42 = arith.mulf %41, %40 : vector<16x128xf32>
    %43 = arith.mulf %30, %42 : vector<16x128xf32>
    %44 = arith.truncf %43 : vector<16x128xf32> to vector<16x128xbf16>
    %c0_20 = arith.constant 0 : index
    %c0_21 = arith.constant 0 : index
    %45 = vector.load %arg7[%c0_20, %c0_21] : memref<128x8xbf16, #tpu.memory_space<vmem>>, vector<128x8xbf16>
    %cst_22 = arith.constant dense<0.000000e+00> : vector<16x8xf32>
    %46 = tpu.matmul %44, %45, %cst_22 {dimension_numbers = #tpu.dot_dimension_numbers<[1], [0], [0], [1], [0, 0, 1, 1], [], []>} : vector<16x128xbf16>, vector<128x8xbf16>, vector<16x8xf32> -> vector<16x8xf32>
    %c0_23 = arith.constant 0 : index
    %c0_24 = arith.constant 0 : index
    %47 = vector.load %arg8[%c0_23, %c0_24] : memref<1x8xf32, #tpu.memory_space<vmem>>, vector<1x8xf32>
    %48 = vector.broadcast %47 : vector<1x8xf32> to vector<16x8xf32>
    %49 = arith.addf %46, %48 : vector<16x8xf32>
    %50 = vector.broadcast %10 : vector<16x1xf32> to vector<16x8xf32>
    %51 = arith.mulf %49, %50 : vector<16x8xf32>
    %52 = vector.extract_strided_slice %0 {offsets = [0, 1], sizes = [16, 8], strides = [1, 1]} : vector<16x9xf32> to vector<16x8xf32>
    %53 = vector.broadcast %7 : vector<16x1xf32> to vector<16x8xf32>
    %54 = arith.mulf %52, %53 : vector<16x8xf32>
    %55 = arith.addf %51, %54 : vector<16x8xf32>
    %c0_25 = arith.constant 0 : index
    %c0_26 = arith.constant 0 : index
    %56 = vector.load %arg9[%c0_25, %c0_26] : memref<16x8xf32, #tpu.memory_space<vmem>>, vector<16x8xf32>
    tpu.vector_store %arg9[%c0_25, %c0_26], %55 {strides = array<i32>} : memref<16x8xf32, #tpu.memory_space<vmem>>, vector<16x8xf32>,
    return
  }
  func.func @transform_0(%arg0: i32) -> (i32, i32) {
    %c0_i32 = arith.constant 0 : i32
    %c0_i32_0 = arith.constant 0 : i32
    return %arg0, %c0_i32 : i32, i32
  }
  func.func @transform_1(%arg0: i32) -> (i32, i32) {
    %c0_i32 = arith.constant 0 : i32
    %c0_i32_0 = arith.constant 0 : i32
    return %arg0, %c0_i32 : i32, i32
  }
  func.func @transform_2(%arg0: i32) -> (i32, i32) {
    %c0_i32 = arith.constant 0 : i32
    %c0_i32_0 = arith.constant 0 : i32
    %c0_i32_1 = arith.constant 0 : i32
    return %c0_i32, %c0_i32_0 : i32, i32
  }
  func.func @transform_3(%arg0: i32) -> (i32, i32) {
    %c0_i32 = arith.constant 0 : i32
    %c0_i32_0 = arith.constant 0 : i32
    %c0_i32_1 = arith.constant 0 : i32
    return %c0_i32, %c0_i32_0 : i32, i32
  }
  func.func @transform_4(%arg0: i32) -> (i32, i32) {
    %c0_i32 = arith.constant 0 : i32
    %c0_i32_0 = arith.constant 0 : i32
    %c0_i32_1 = arith.constant 0 : i32
    return %c0_i32, %c0_i32_0 : i32, i32
  }
  func.func @transform_5(%arg0: i32) -> (i32, i32) {
    %c0_i32 = arith.constant 0 : i32
    %c0_i32_0 = arith.constant 0 : i32
    %c0_i32_1 = arith.constant 0 : i32
    return %c0_i32, %c0_i32_0 : i32, i32
  }
  func.func @transform_6(%arg0: i32) -> (i32, i32) {
    %c0_i32 = arith.constant 0 : i32
    %c0_i32_0 = arith.constant 0 : i32
    %c0_i32_1 = arith.constant 0 : i32
    return %c0_i32, %c0_i32_0 : i32, i32
  }
  func.func @transform_7(%arg0: i32) -> (i32, i32) {
    %c0_i32 = arith.constant 0 : i32
    %c0_i32_0 = arith.constant 0 : i32
    %c0_i32_1 = arith.constant 0 : i32
    return %c0_i32, %c0_i32_0 : i32, i32
  }
  func.func @transform_8(%arg0: i32) -> (i32, i32) {
    %c0_i32 = arith.constant 0 : i32
    %c0_i32_0 = arith.constant 0 : i32
    return %arg0, %c0_i32 : i32, i32
  }
}

</mosaic_0001>

<llo_original>
// kernel: tpu_custom_call.1
$region0: #{tpu_custom_call.1}
  #allocation0 [shape = 'u32[]', space=smem, size = 0x4, offset = 0x4, fixed_abs, tag = 'smem constant byte address 0x4 - core index']
  #allocation1 [shape = 'u32[144,128]{1,0:T(1,128)}', space=vmem, size = 0x12000, scoped, tag = 'internal scratch']
  %s0 = inlined_call_operand.vmem [shape: bf16[16,48], index: 0, kind: input, shape index: {}]
  %s1 = inlined_call_operand.vmem [shape: f32[16,9], index: 1, kind: input, shape index: {}]
  %s2 = inlined_call_operand.vmem [shape: bf16[48,128], index: 2, kind: input, shape index: {}]
  %s3 = inlined_call_operand.vmem [shape: bf16[9,128], index: 3, kind: input, shape index: {}]
  %s4 = inlined_call_operand.vmem [shape: f32[1,128], index: 4, kind: input, shape index: {}]
  %s5 = inlined_call_operand.vmem [shape: f32[1,128], index: 5, kind: input, shape index: {}]
  %s6 = inlined_call_operand.vmem [shape: bf16[128,8], index: 6, kind: input, shape index: {}]
  %s7 = inlined_call_operand.vmem [shape: f32[1,8], index: 7, kind: input, shape index: {}]
  %s8 = inlined_call_operand.vmem [shape: f32[16,8], index: 8, kind: output, shape index: {}]
  %s9 = sld [smem:[#allocation0]]
  $region42: #{tpu_custom_call.1} parent=0
    _
  %s11 = ssub.s32 1, %s9
  %s12 = scalar_select 0, %s11, %s9
  // Predicated region
  $region2: #{tpu_custom_call.1} parent=0 // pred_check
    _
  $region3: #{tpu_custom_call.1} parent=0 // pred_check_branch
    %14 = sbr.rel (0) target = $region5
  $region4: #{tpu_custom_call.1} parent=0 // pred_region
    _
  $region5: #{tpu_custom_call.1} parent=0 // pred_fallthru
    _
  // Predicated region
  $region6: #{tpu_custom_call.1} parent=0 // pred_check
    _
  $region7: #{tpu_custom_call.1} parent=0 // pred_check_branch
    %16 = sbr.rel (0) target = $region9
  $region8: #{tpu_custom_call.1} parent=0 // pred_region
    _
  $region9: #{tpu_custom_call.1} parent=0 // pred_fallthru
    _
  // Predicated region
  $region10: #{tpu_custom_call.1} parent=0 // pred_check
    _
  $region11: #{tpu_custom_call.1} parent=0 // pred_check_branch
    %18 = sbr.rel (0) target = $region13
  $region12: #{tpu_custom_call.1} parent=0 // pred_region
    _
  $region13: #{tpu_custom_call.1} parent=0 // pred_fallthru
    _
  // Predicated region
  $region14: #{tpu_custom_call.1} parent=0 // pred_check
    _
  $region15: #{tpu_custom_call.1} parent=0 // pred_check_branch
    %20 = sbr.rel (0) target = $region17
  $region16: #{tpu_custom_call.1} parent=0 // pred_region
    _
  $region17: #{tpu_custom_call.1} parent=0 // pred_fallthru
    _
  // Predicated region
  $region18: #{tpu_custom_call.1} parent=0 // pred_check
    _
  $region19: #{tpu_custom_call.1} parent=0 // pred_check_branch
    %22 = sbr.rel (0) target = $region21
  $region20: #{tpu_custom_call.1} parent=0 // pred_region
    _
  $region21: #{tpu_custom_call.1} parent=0 // pred_fallthru
    _
  // Predicated region
  $region22: #{tpu_custom_call.1} parent=0 // pred_check
    _
  $region23: #{tpu_custom_call.1} parent=0 // pred_check_branch
    %24 = sbr.rel (0) target = $region25
  $region24: #{tpu_custom_call.1} parent=0 // pred_region
    _
  $region25: #{tpu_custom_call.1} parent=0 // pred_fallthru
    _
  // Predicated region
  $region26: #{tpu_custom_call.1} parent=0 // pred_check
    _
  $region27: #{tpu_custom_call.1} parent=0 // pred_check_branch
    %26 = sbr.rel (0) target = $region29
  $region28: #{tpu_custom_call.1} parent=0 // pred_region
    _
  $region29: #{tpu_custom_call.1} parent=0 // pred_fallthru
    _
  // Predicated region
  $region30: #{tpu_custom_call.1} parent=0 // pred_check
    _
  $region31: #{tpu_custom_call.1} parent=0 // pred_check_branch
    %28 = sbr.rel (0) target = $region33
  $region32: #{tpu_custom_call.1} parent=0 // pred_region
    _
  $region33: #{tpu_custom_call.1} parent=0 // pred_fallthru
    _
  %v30 = vld [vmem:[%s1] sm:$0xff]
  %v31 = vld [vmem:[%s1 + $0x8] sm:$0xff]
  %v32 = vmul.f32 %v30, %v30
  %v33 = vmul.f32 %v31, %v31
  %v34 = vadd.f32 %v32, 1.0
  %v35 = vadd.f32 %v33, 1.0
  %v36 = vrsqrt.pop %v34
  %v37 = vrsqrt.pop %v35
  %v38 = vrcp.pop %v34
  %v39 = vmul.f32 1.0, %v38
  %v40 = vrcp.pop %v35
  %v41 = vmul.f32 1.0, %v40
  %v42 = vmul.f32 %v30, %v36
  %v43 = vmul.f32 %v31, %v37
  %45 = vset.pattern.permute.xlu0 0
  %46 = vperm.xlu0 %45, %v36
  %v47 = vpop.permute.xlu0 %46
  %50 = vset.pattern.permute.xlu0 0
  %51 = vperm.xlu0 %50, %v37
  %v52 = vpop.permute.xlu0 %51
  %v54 = vmul.f32 %v30, %v47
  %v55 = vmul.f32 %v31, %v52
  %v56 = vpack.c.bf16 %v55, %v54
  %v57 = vlog2.pop %v30
  %v58 = vmul.f32 %v57, 0.6931472
  %v59 = vlog2.pop %v31
  %v60 = vmul.f32 %v59, 0.6931472
  %v61 = vmul.f32 %v58, 0.25
  %v62 = vmul.f32 %v60, 0.25
  %v63 = vld [vmem:[%s0] sm:$0xf]
  %v64 = vld [vmem:[%s0 + $0x4] sm:$0xf]
  %v65 = vld [vmem:[%s2] sm:$0xf]
  %v66 = vld [vmem:[%s2 + $0x4] sm:$0xf]
  %v67 = vld [vmem:[%s2 + $0x8] sm:$0xf]
  %v68 = vld [vmem:[%s2 + $0xc] sm:$0xf]
  %v69 = vld [vmem:[%s2 + $0x10] sm:$0xf]
  %v70 = vld [vmem:[%s2 + $0x14] sm:$0xf]
  %v71 = vld [vmem:[%s3] sm:$0xf]
  %v72 = vld [vmem:[%s3 + $0x4] sm:$0x1]
  %v75 = vunpack.c.l.b16 %v71
  %v76 = vunpack.c.l.b16 %v72
  %v77 = vpack.c.b16 %v76, %v75
  %vm78 = vcmask 72704
  %v80 = vsel %vm78, %v56, 0
  %vm82 = vcmask 1043456
  %vm83 = vcmask 1044480
  %v84 = vsel %vm82, 4294967295, 65535
  %v85 = vsel %vm83, %v84, 0
  %v87 = vand.u32 %v77, %v85
  %89 = vmatprep.subr.bf16.mxu0 0
  %90 = vmatpush1.bf16.msra.mxu0 %v87
  %91 = vmatprep.subr.bf16.mxu0 0
  %92 = vmatpush1.bf16.msra.mxu0 0
  %93 = vmatprep.subr.bf16.mxu0 0
  %94 = vmatpush1.bf16.msra.mxu0 0
  %95 = vmatprep.subr.bf16.mxu0 0
  %96 = vmatpush1.bf16.msra.mxu0 0
  %97 = vmatprep.subr.bf16.mxu0 0
  %98 = vmatpush1.bf16.msra.mxu0 0
  %99 = vmatprep.subr.bf16.mxu0 0
  %100 = vmatpush1.bf16.msra.mxu0 0
  %101 = vmatprep.subr.bf16.mxu0 0
  %102 = vmatpush1.bf16.msra.mxu0 0
  %103 = vmatprep.subr.bf16.mxu0 0
  %104 = vmatpush1.bf16.msra.mxu0 0
  %105 = vmatprep.subr.bf16.mxu0 0
  %106 = vmatpush1.bf16.msra.mxu0 0
  %107 = vmatprep.subr.bf16.mxu0 0
  %108 = vmatpush1.bf16.msra.mxu0 0
  %109 = vmatprep.subr.bf16.mxu0 0
  %110 = vmatpush1.bf16.msra.mxu0 0
  %111 = vmatprep.subr.bf16.mxu0 0
  %112 = vmatpush1.bf16.msra.mxu0 0
  %113 = vmatprep.subr.bf16.mxu0 0
  %114 = vmatpush1.bf16.msra.mxu0 0
  %115 = vmatprep.subr.bf16.mxu0 0
  %116 = vmatpush1.bf16.msra.mxu0 0
  %117 = vmatprep.subr.bf16.mxu0 0
  %118 = vmatpush1.bf16.msra.mxu0 0
  %119 = vmatprep.subr.bf16.mxu0 0
  %120 = vmatpush1.bf16.msra.mxu0 0
  %121 = vmatprep.mubr.bf16.mxu0 0
  %122 = vmatmul.mubr.bf16.gmra.mrb[0].mxu0 %v80
  %v123 = vpop.f32.mrb[0].mxu0
  %v124 = vadd.f32 0.0, %v123
  %v125 = vpop.f32.mrb[0].mxu0
  %v126 = vpop.f32.mrb[0].mxu0
  %v127 = vadd.f32 0.0, %v126
  %v128 = vpop.f32.mrb[0].mxu0
  %129 = vdwg.mxu0
  %v132 = vunpack.c.l.b16 %v63
  %v133 = vunpack.c.l.b16 %v64
  %v134 = vpack.c.b16 %v133, %v132
  %v141 = vunpack.c.l.b16 %v65
  %v142 = vunpack.c.l.b16 %v66
  %v143 = vunpack.c.l.b16 %v67
  %v144 = vunpack.c.l.b16 %v68
  %v145 = vunpack.c.l.b16 %v69
  %v146 = vunpack.c.l.b16 %v70
  %v147 = vpack.c.b16 %v142, %v141
  %v148 = vpack.c.b16 %v144, %v143
  %v149 = vpack.c.b16 %v146, %v145
  %vm153 = vcmask 392192
  %v155 = vsel %vm153, %v134, 0
  %157 = vmatprep.subr.bf16.mxu0 0
  %158 = vmatpush1.bf16.msra.mxu0 %v147
  %159 = vmatprep.subr.bf16.mxu0 0
  %160 = vmatpush1.bf16.msra.mxu0 %v148
  %161 = vmatprep.subr.bf16.mxu0 0
  %162 = vmatpush1.bf16.msra.mxu0 %v149
  %163 = vmatprep.subr.bf16.mxu0 0
  %164 = vmatpush1.bf16.msra.mxu0 0
  %165 = vmatprep.subr.bf16.mxu0 0
  %166 = vmatpush1.bf16.msra.mxu0 0
  %167 = vmatprep.subr.bf16.mxu0 0
  %168 = vmatpush1.bf16.msra.mxu0 0
  %169 = vmatprep.subr.bf16.mxu0 0
  %170 = vmatpush1.bf16.msra.mxu0 0
  %171 = vmatprep.subr.bf16.mxu0 0
  %172 = vmatpush1.bf16.msra.mxu0 0
  %173 = vmatprep.subr.bf16.mxu0 0
  %174 = vmatpush1.bf16.msra.mxu0 0
  %175 = vmatprep.subr.bf16.mxu0 0
  %176 = vmatpush1.bf16.msra.mxu0 0
  %177 = vmatprep.subr.bf16.mxu0 0
  %178 = vmatpush1.bf16.msra.mxu0 0
  %179 = vmatprep.subr.bf16.mxu0 0
  %180 = vmatpush1.bf16.msra.mxu0 0
  %181 = vmatprep.subr.bf16.mxu0 0
  %182 = vmatpush1.bf16.msra.mxu0 0
  %183 = vmatprep.subr.bf16.mxu0 0
  %184 = vmatpush1.bf16.msra.mxu0 0
  %185 = vmatprep.subr.bf16.mxu0 0
  %186 = vmatpush1.bf16.msra.mxu0 0
  %187 = vmatprep.subr.bf16.mxu0 0
  %188 = vmatpush1.bf16.msra.mxu0 0
  %189 = vmatprep.mubr.bf16.mxu0 0
  %190 = vmatmul.mubr.bf16.gmra.mrb[0].mxu0 %v155
  %v191 = vpop.f32.mrb[0].mxu0
  %v192 = vadd.f32 %v124, %v191
  %v193 = vpop.f32.mrb[0].mxu0
  %v194 = vpop.f32.mrb[0].mxu0
  %v195 = vadd.f32 %v127, %v194
  %v196 = vpop.f32.mrb[0].mxu0
  %197 = vdwg.mxu0
  %v198 = vld [vmem:[%s4] sm:$0x1]
  %200 = vset.pattern.permute.xlu0 0
  %201 = vperm.xlu0 %200, %v61
  %v202 = vpop.permute.xlu0 %201
  %205 = vset.pattern.permute.xlu0 0
  %206 = vperm.xlu0 %205, %v62
  %v207 = vpop.permute.xlu0 %206
  %v210 = vlaneseq
  %v211 = vshrl.u32 %v210, 7
  %v212 = vsub.s32 0, %v211
  %v213 = vrot.slane %v198, %v212
  %v215 = vmul.f32 %v202, %v213
  %v216 = vmul.f32 %v207, %v213
  %v217 = vadd.f32 %v192, %v215
  %v218 = vadd.f32 %v195, %v216
  %v219 = vld [vmem:[%s5] sm:$0x1]
  %v221 = vlaneseq
  %v222 = vshrl.u32 %v221, 7
  %v223 = vsub.s32 0, %v222
  %v224 = vrot.slane %v219, %v223
  %v226 = vadd.f32 %v217, %v224
  %v227 = vadd.f32 %v218, %v224
  %v228 = vmul.f32 %v226, %v226
  %v229 = vmul.f32 %v227, %v227
  %v230 = vmul.f32 %v226, %v228
  %v231 = vmul.f32 %v227, %v229
  %v232 = vmul.f32 %v230, 0.044715
  %v233 = vmul.f32 %v231, 0.044715
  %v234 = vadd.f32 %v226, %v232
  %v235 = vadd.f32 %v227, %v233
  %v236 = vmul.f32 %v234, 0.7978846
  %v237 = vmul.f32 %v235, 0.7978846
  %v238 = vtanh.pop %v236
  %v239 = vtanh.pop %v237
  %v240 = vadd.f32 %v238, 1.0
  %v241 = vadd.f32 %v239, 1.0
  %v242 = vmul.f32 %v240, 0.5
  %v243 = vmul.f32 %v241, 0.5
  %v244 = vmul.f32 %v226, %v242
  %v245 = vmul.f32 %v227, %v243
  %v246 = vpack.c.bf16 %v245, %v244
  %v247 = vld [vmem:[%s6] sm:$0xf]
  %v248 = vld [vmem:[%s6 + $0x4] sm:$0xf]
  %v249 = vld [vmem:[%s6 + $0x8] sm:$0xf]
  %v250 = vld [vmem:[%s6 + $0xc] sm:$0xf]
  %v251 = vld [vmem:[%s6 + $0x10] sm:$0xf]
  %v252 = vld [vmem:[%s6 + $0x14] sm:$0xf]
  %v253 = vld [vmem:[%s6 + $0x18] sm:$0xf]
  %v254 = vld [vmem:[%s6 + $0x1c] sm:$0xf]
  %v255 = vld [vmem:[%s6 + $0x20] sm:$0xf]
  %v256 = vld [vmem:[%s6 + $0x24] sm:$0xf]
  %v257 = vld [vmem:[%s6 + $0x28] sm:$0xf]
  %v258 = vld [vmem:[%s6 + $0x2c] sm:$0xf]
  %v259 = vld [vmem:[%s6 + $0x30] sm:$0xf]
  %v260 = vld [vmem:[%s6 + $0x34] sm:$0xf]
  %v261 = vld [vmem:[%s6 + $0x38] sm:$0xf]
  %v262 = vld [vmem:[%s6 + $0x3c] sm:$0xf]
  %v263 = vld [vmem:[%s7] sm:$0x1]
  %v265 = vlaneseq
  %v266 = vshrl.u32 %v265, 7
  %v267 = vsub.s32 0, %v266
  %v268 = vrot.slane %v263, %v267
  %v286 = vunpack.c.l.b16 %v247
  %v287 = vunpack.c.l.b16 %v248
  %v288 = vunpack.c.l.b16 %v249
  %v289 = vunpack.c.l.b16 %v250
  %v290 = vunpack.c.l.b16 %v251
  %v291 = vunpack.c.l.b16 %v252
  %v292 = vunpack.c.l.b16 %v253
  %v293 = vunpack.c.l.b16 %v254
  %v294 = vunpack.c.l.b16 %v255
  %v295 = vunpack.c.l.b16 %v256
  %v296 = vunpack.c.l.b16 %v257
  %v297 = vunpack.c.l.b16 %v258
  %v298 = vunpack.c.l.b16 %v259
  %v299 = vunpack.c.l.b16 %v260
  %v300 = vunpack.c.l.b16 %v261
  %v301 = vunpack.c.l.b16 %v262
  %v302 = vpack.c.b16 %v287, %v286
  %v303 = vpack.c.b16 %v289, %v288
  %v304 = vpack.c.b16 %v291, %v290
  %v305 = vpack.c.b16 %v293, %v292
  %v306 = vpack.c.b16 %v295, %v294
  %v307 = vpack.c.b16 %v297, %v296
  %v308 = vpack.c.b16 %v299, %v298
  %v309 = vpack.c.b16 %v301, %v300
  %318 = vmatprep.subr.bf16.mxu0 0
  %319 = vmatpush1.bf16.msra.mxu0 %v302
  %320 = vmatprep.subr.bf16.mxu0 0
  %321 = vmatpush1.bf16.msra.mxu0 %v303
  %322 = vmatprep.subr.bf16.mxu0 0
  %323 = vmatpush1.bf16.msra.mxu0 %v304
  %324 = vmatprep.subr.bf16.mxu0 0
  %325 = vmatpush1.bf16.msra.mxu0 %v305
  %326 = vmatprep.subr.bf16.mxu0 0
  %327 = vmatpush1.bf16.msra.mxu0 %v306
  %328 = vmatprep.subr.bf16.mxu0 0
  %329 = vmatpush1.bf16.msra.mxu0 %v307
  %330 = vmatprep.subr.bf16.mxu0 0
  %331 = vmatpush1.bf16.msra.mxu0 %v308
  %332 = vmatprep.subr.bf16.mxu0 0
  %333 = vmatpush1.bf16.msra.mxu0 %v309
  %334 = vmatprep.subr.bf16.mxu0 0
  %335 = vmatpush1.bf16.msra.mxu0 0
  %336 = vmatprep.subr.bf16.mxu0 0
  %337 = vmatpush1.bf16.msra.mxu0 0
  %338 = vmatprep.subr.bf16.mxu0 0
  %339 = vmatpush1.bf16.msra.mxu0 0
  %340 = vmatprep.subr.bf16.mxu0 0
  %341 = vmatpush1.bf16.msra.mxu0 0
  %342 = vmatprep.subr.bf16.mxu0 0
  %343 = vmatpush1.bf16.msra.mxu0 0
  %344 = vmatprep.subr.bf16.mxu0 0
  %345 = vmatpush1.bf16.msra.mxu0 0
  %346 = vmatprep.subr.bf16.mxu0 0
  %347 = vmatpush1.bf16.msra.mxu0 0
  %348 = vmatprep.subr.bf16.mxu0 0
  %349 = vmatpush1.bf16.msra.mxu0 0
  %350 = vmatprep.mubr.bf16.mxu0 0
  %351 = vmatmul.mubr.bf16.gmra.mrb[0].mxu0 %v246
  %v352 = vpop.f32.mrb[0].mxu0
  %v353 = vadd.f32 %v268, %v352
  %v354 = vpop.f32.mrb[0].mxu0
  %v355 = vpop.f32.mrb[0].mxu0
  %v356 = vadd.f32 %v268, %v355
  %v357 = vpop.f32.mrb[0].mxu0
  %358 = vdwg.mxu0
  %360 = vset.pattern.permute.xlu0 0
  %361 = vperm.xlu0 %360, %v42
  %v362 = vpop.permute.xlu0 %361
  %365 = vset.pattern.permute.xlu0 0
  %366 = vperm.xlu0 %365, %v43
  %v367 = vpop.permute.xlu0 %366
  %v369 = vmul.f32 %v353, %v362
  %v370 = vmul.f32 %v356, %v367
  %372 = vset.pattern.permute.xlu0 0
  %373 = vperm.xlu0 %372, %v39
  %v374 = vpop.permute.xlu0 %373
  %377 = vset.pattern.permute.xlu0 0
  %378 = vperm.xlu0 %377, %v41
  %v379 = vpop.permute.xlu0 %378
  %v381 = vmul.f32 %v30, %v374
  %v382 = vmul.f32 %v31, %v379
  %385 = vrot.lane.b32.xlu0 %v381, 127
  %v386 = vpop.permute.xlu0 %385
  %387 = vrot.lane.b32.xlu0 %v382, 127
  %v388 = vpop.permute.xlu0 %387
  %v391 = vadd.f32 %v369, %v386
  %v392 = vadd.f32 %v370, %v388
  %vm393 = vcmask 64512
  %394 = vst.msk [vmem:[%s8] sm:$0xff] %vm393, %v391
  %395 = vst.msk [vmem:[%s8 + $0x8] sm:$0xff] %vm393, %v392
  // Predicated region
  $region34: #{tpu_custom_call.1} parent=0 // pred_check
    _
  $region35: #{tpu_custom_call.1} parent=0 // pred_check_branch
    %397 = sbr.rel (0) target = $region37
  $region36: #{tpu_custom_call.1} parent=0 // pred_region
    _
  $region37: #{tpu_custom_call.1} parent=0 // pred_fallthru
    _
  // Predicated region
  $region38: #{tpu_custom_call.1} parent=0 // pred_check
    _
  $region39: #{tpu_custom_call.1} parent=0 // pred_check_branch
    %399 = sbr.rel (0) target = $region41
  $region40: #{tpu_custom_call.1} parent=0 // pred_region
    _
  $region41: #{tpu_custom_call.1} parent=0 // pred_fallthru
    _

</llo_original>
